<compile_context>
chip_gen: v7x
topology: tpu7x:2x2x1
jax: 0.10.0
libtpu: 0.0.40
codegen_flags: <defaults>
</compile_context>

<pallas_src>
import jax
import jax.numpy as jnp
from jax.experimental import pallas as pl
from jax.experimental.pallas import tpu as pltpu


# ----------------------------------------------------------------------------
# Kernel 1: fused conv (4 space-to-depth taps -> MXU dots) + per-image
#           per-channel sum / sum-of-squares; output stored NCHW-transposed.
# ----------------------------------------------------------------------------
def _make_conv_stats_kernel(th, Wo, C4):
    def kernel(s_ref, w_ref, y_ref, stats_ref, sum_ref, sq_ref):
        hb = pl.program_id(1)

        @pl.when(hb == 0)
        def _():
            sum_ref[...] = jnp.zeros_like(sum_ref)
            sq_ref[...] = jnp.zeros_like(sq_ref)

        # (th + 1, Wo + 1, 4*Cin) window (1-row/1-col halo) of the resident plane.
        r0 = hb * th
        win = s_ref[0, pl.ds(r0, th + 1), :, :]

        acc = None
        for bi in range(2):
            for bj in range(2):
                xs = win[bi:bi + th, bj:bj + Wo, :].reshape(th * Wo, C4)
                d = jnp.dot(xs, w_ref[2 * bi + bj],
                            preferred_element_type=jnp.float32)
                acc = d if acc is None else acc + d

        # BatchNorm statistics: f32 scratch accumulators, one final store.
        sum_ref[...] += jnp.sum(acc, axis=0, keepdims=True)
        sq_ref[...] += jnp.sum(acc * acc, axis=0, keepdims=True)

        # Store already transposed: (Cout, th*Wo) -> lane-dense, NCHW order.
        y_ref[0, :, :] = acc.T

        @pl.when(hb == pl.num_programs(1) - 1)
        def _():
            stats_ref[0, 0:1, :] = sum_ref[...]
            stats_ref[0, 1:2, :] = sq_ref[...]

    return kernel


def _conv_with_stats(s, w2, *, N, Cout, Ho, Wo, th):
    _, Hp2, Wp2, C4 = s.shape
    n_hb = Ho // th
    kernel = _make_conv_stats_kernel(th, Wo, C4)
    y, stats = pl.pallas_call(
        kernel,
        out_shape=(
            jax.ShapeDtypeStruct((N, Cout, Ho * Wo), jnp.float32),
            jax.ShapeDtypeStruct((N, 2, Cout), jnp.float32),
        ),
        grid_spec=pltpu.PrefetchScalarGridSpec(
            num_scalar_prefetch=0,
            grid=(N, n_hb),
            in_specs=[
                # full space-to-depth image: stays resident across the hb axis
                pl.BlockSpec((1, Hp2, Wp2, C4), lambda n, hb: (n, 0, 0, 0)),
                # packed weights: resident across the whole grid
                pl.BlockSpec((4, C4, Cout), lambda n, hb: (0, 0, 0)),
            ],
            out_specs=[
                pl.BlockSpec((1, Cout, th * Wo), lambda n, hb: (n, 0, hb)),
                pl.BlockSpec((1, 2, Cout), lambda n, hb: (n, 0, 0)),
            ],
            scratch_shapes=[
                pltpu.VMEM((1, Cout), jnp.float32),   # running sum
                pltpu.VMEM((1, Cout), jnp.float32),   # running sum of squares
            ],
        ),
        compiler_params=pltpu.CompilerParams(
            dimension_semantics=("parallel", "arbitrary")),
    )(s, w2)
    return y, stats


# ----------------------------------------------------------------------------
# Kernel 2: BatchNorm affine (precomputed per-channel scale/shift) +
#           LeakyReLU(0.2), in place over the NCHW conv output.
# ----------------------------------------------------------------------------
def _bn_act_kernel(y_ref, scale_ref, shift_ref, o_ref):
    z = y_ref[0, :, :] * scale_ref[...] + shift_ref[...]
    o_ref[0, :, :] = jnp.where(z >= 0, z, 0.2 * z)


def _bn_act(y, scale, shift, *, th, Wo):
    N, Cout, HW = y.shape
    n_hb = HW // (th * Wo)
    return pl.pallas_call(
        _bn_act_kernel,
        out_shape=jax.ShapeDtypeStruct((N, Cout, HW), jnp.float32),
        grid_spec=pltpu.PrefetchScalarGridSpec(
            num_scalar_prefetch=0,
            grid=(N, n_hb),
            in_specs=[
                pl.BlockSpec((1, Cout, th * Wo), lambda n, hb: (n, 0, hb)),
                pl.BlockSpec((Cout, 1), lambda n, hb: (0, 0)),
                pl.BlockSpec((Cout, 1), lambda n, hb: (0, 0)),
            ],
            out_specs=pl.BlockSpec((1, Cout, th * Wo), lambda n, hb: (n, 0, hb)),
        ),
        input_output_aliases={0: 0},   # normalize in place: no extra HBM buffer
        compiler_params=pltpu.CompilerParams(
            dimension_semantics=("parallel", "parallel")),
    )(y, scale, shift)


# ----------------------------------------------------------------------------
# Wrapper reproducing DownSampleConv.forward (default: batchnorm + LeakyReLU)
# ----------------------------------------------------------------------------
def _pick_th(Ho, Wo, target_rows):
    """Largest th | Ho with a lane-dense (128-multiple) th*Wo tile within budget."""
    good = [t for t in range(1, Ho + 1)
            if Ho % t == 0 and (t * Wo) % 128 == 0 and t * Wo <= target_rows]
    if good:
        return max(good)
    return Ho   # whole output plane per grid step (always a legal block shape)


def downsample_conv(x, w, b, gamma, beta, *, eps=1e-5, target_rows=1024,
                    compute_dtype=jnp.bfloat16):
    """x: (N, Cin, H, W) f32 (H, W even).  w: (Cout, Cin, 4, 4).
    Returns (N, Cout, H//2, W//2) f32."""
    # TODO(synk): only the default DownSampleConv config (kernel=4, stride=2,
    # padding=1, batchnorm=True, activation=True) is implemented.
    del b  # conv bias is cancelled exactly by training-mode BatchNorm below
    N, Cin, H, W = x.shape
    Cout = w.shape[0]
    assert H % 2 == 0 and W % 2 == 0, "expects even spatial dims"
    Ho, Wo = H // 2, W // 2
    Hp2, Wp2 = Ho + 1, Wo + 1
    C4 = 4 * Cin

    # Reflect pad (PyTorch padding_mode='reflect'), NHWC, then 2x2 space-to-depth:
    #   S[n, i, j, (rh*2 + rw)*Cin + ci] = xpad[n, ci, 2i+rh, 2j+rw]
    xp = jnp.pad(x, ((0, 0), (0, 0), (1, 1), (1, 1)), mode="reflect")
    s = (xp.transpose(0, 2, 3, 1)
           .reshape(N, Hp2, 2, Wp2, 2, Cin)
           .transpose(0, 1, 3, 2, 4, 5)
           .reshape(N, Hp2, Wp2, C4)
           .astype(compute_dtype))

    # Weights packed to match: W2[2*bi + bj, (rh*2 + rw)*Cin + ci, co]
    #                            = w[co, ci, 2*bi + rh, 2*bj + rw]
    w2 = (w.transpose(2, 3, 1, 0)
           .reshape(2, 2, 2, 2, Cin, Cout)
           .transpose(0, 2, 1, 3, 4, 5)
           .reshape(4, C4, Cout)
           .astype(compute_dtype))

    th = _pick_th(Ho, Wo, target_rows)

    # Pallas kernel 1: conv (bf16 MXU operands, f32 acc) + per-image stats.
    y, stats = _conv_with_stats(s, w2, N=N, Cout=Cout, Ho=Ho, Wo=Wo, th=th)

    # Fold training-mode BatchNorm (biased batch variance) into scale/shift.
    totals = stats.sum(axis=0)                       # (2, Cout)
    cnt = N * Ho * Wo
    mean = totals[0] / cnt
    var = jnp.maximum(totals[1] / cnt - mean * mean, 0.0)
    inv = jax.lax.rsqrt(var + eps)
    scale = (gamma * inv).astype(jnp.float32).reshape(Cout, 1)
    shift = (beta - mean * gamma * inv).astype(jnp.float32).reshape(Cout, 1)

    # Pallas kernel 2: normalize + LeakyReLU(0.2), in place, already NCHW.
    out = _bn_act(y, scale, shift, th=th, Wo=Wo)
    return out.reshape(N, Cout, Ho, Wo)


# ----------------------------------------------------------------------------
# Pure-JAX reference (f32) for verification
# ----------------------------------------------------------------------------
def reference(x, w, b, gamma, beta, eps=1e-5):
    xp = jnp.pad(x, ((0, 0), (0, 0), (1, 1), (1, 1)), mode="reflect")
    y = jax.lax.conv_general_dilated(
        xp, w, window_strides=(2, 2), padding="VALID",
        dimension_numbers=("NCHW", "OIHW", "NCHW")) + b.reshape(1, -1, 1, 1)
    mean = y.mean(axis=(0, 2, 3), keepdims=True)
    var = y.var(axis=(0, 2, 3), keepdims=True)
    yn = (y - mean) / jnp.sqrt(var + eps) * gamma.reshape(1, -1, 1, 1) \
         + beta.reshape(1, -1, 1, 1)
    return jnp.where(yn >= 0, yn, 0.2 * yn)


if __name__ == "__main__":
    ds = jax.jit(downsample_conv, static_argnames=("target_rows",))

    # --- test 1: small module-sized config --------------------------------
    k1, k2, k3, k4, k5 = jax.random.split(jax.random.PRNGKey(0), 5)
    N, Cin, H, W, Cout = 2, 4, 16, 16, 8
    x = jax.random.normal(k1, (N, Cin, H, W), jnp.float32)
    w = jax.random.normal(k2, (Cout, Cin, 4, 4), jnp.float32) * 0.1
    b = jax.random.normal(k3, (Cout,), jnp.float32) * 0.1
    gamma = 1.0 + 0.1 * jax.random.normal(k4, (Cout,), jnp.float32)
    beta = 0.1 * jax.random.normal(k5, (Cout,), jnp.float32)

    out = jax.block_until_ready(ds(x, w, b, gamma, beta))
    ref = reference(x, w, b, gamma, beta)
    assert out.shape == (N, Cout, H // 2, W // 2), out.shape
    err = float(jnp.max(jnp.abs(out - ref)))
    assert err < 2.5e-2, err          # bf16 MXU operands vs f32 reference

    # --- test 2: forces a multi-tile row sweep (n_hb > 1) ------------------
    k6, k7, k8, k9, k10 = jax.random.split(jax.random.PRNGKey(1), 5)
    N2, Cin2, H2, W2c, Cout2 = 2, 8, 32, 32, 16
    x2 = jax.random.normal(k6, (N2, Cin2, H2, W2c), jnp.float32)
    wt2 = jax.random.normal(k7, (Cout2, Cin2, 4, 4), jnp.float32) * 0.1
    b2 = jax.random.normal(k8, (Cout2,), jnp.float32) * 0.1
    g2 = 1.0 + 0.1 * jax.random.normal(k9, (Cout2,), jnp.float32)
    be2 = 0.1 * jax.random.normal(k10, (Cout2,), jnp.float32)

    out2 = jax.block_until_ready(ds(x2, wt2, b2, g2, be2, target_rows=128))
    ref2 = reference(x2, wt2, b2, g2, be2)
    assert out2.shape == (N2, Cout2, H2 // 2, W2c // 2), out2.shape
    err2 = float(jnp.max(jnp.abs(out2 - ref2)))
    assert err2 < 2.5e-2, err2

    print("KERNEL_OK")
</pallas_src>

<mosaic_0001>
module attributes {stable_mosaic.version = 11 : i64} {
  func.func @kernel(%arg0: i32, %arg1: i32, %arg2: memref<1x9x9x16xbf16, #tpu.memory_space<vmem>>, %arg3: memref<4x16x8xbf16, #tpu.memory_space<vmem>>, %arg4: memref<1x8x64xf32, #tpu.memory_space<vmem>>, %arg5: memref<1x2x8xf32, #tpu.memory_space<vmem>>, %arg6: memref<1x8xf32, #tpu.memory_space<vmem>>, %arg7: memref<1x8xf32, #tpu.memory_space<vmem>>) attributes {dimension_semantics = [#tpu.dimension_semantics<parallel>, #tpu.dimension_semantics<arbitrary>], iteration_bounds = array<i64: 2, 1>, scalar_prefetch = 0 : i64, scratch_operands = 2 : i64, tpu.core_type = #tpu.core_type<tc>, window_params = [{transform_indices = @transform_0, window_bounds = array<i64: 1, 9, 9, 16>}, {pipeline_mode = #tpu.pipeline_mode<synchronous>, transform_indices = @transform_1, window_bounds = array<i64: 4, 16, 8>}, {transform_indices = @transform_2, window_bounds = array<i64: 1, 8, 64>}, {transform_indices = @transform_3, window_bounds = array<i64: 1, 2, 8>}]} {
    %c0_i32 = arith.constant 0 : i32
    %0 = arith.cmpi eq, %arg1, %c0_i32 : i32
    %1 = arith.extui %0 : i1 to i32
    %c0_i32_0 = arith.constant 0 : i32
    %2 = arith.cmpi ne, %1, %c0_i32_0 : i32
    scf.if %2 {
      %cst_30 = arith.constant 0.000000e+00 : f32
      %48 = vector.broadcast %cst_30 : f32 to vector<1x8xf32>
      %c0_31 = arith.constant 0 : index
      %c0_32 = arith.constant 0 : index
      %49 = vector.load %arg6[%c0_31, %c0_32] : memref<1x8xf32, #tpu.memory_space<vmem>>, vector<1x8xf32>
      tpu.vector_store %arg6[%c0_31, %c0_32], %48 {strides = array<i32>} : memref<1x8xf32, #tpu.memory_space<vmem>>, vector<1x8xf32>,
      %cst_33 = arith.constant 0.000000e+00 : f32
      %50 = vector.broadcast %cst_33 : f32 to vector<1x8xf32>
      %c0_34 = arith.constant 0 : index
      %c0_35 = arith.constant 0 : index
      %51 = vector.load %arg7[%c0_34, %c0_35] : memref<1x8xf32, #tpu.memory_space<vmem>>, vector<1x8xf32>
      tpu.vector_store %arg7[%c0_34, %c0_35], %50 {strides = array<i32>} : memref<1x8xf32, #tpu.memory_space<vmem>>, vector<1x8xf32>,
    } else {
    }
    %c8_i32 = arith.constant 8 : i32
    %3 = arith.muli %arg1, %c8_i32 : i32
    %c0 = arith.constant 0 : index
    %4 = arith.index_cast %3 : i32 to index
    %c0_1 = arith.constant 0 : index
    %c0_2 = arith.constant 0 : index
    %5 = vector.load %arg2[%c0, %4, %c0_1, %c0_2] : memref<1x9x9x16xbf16, #tpu.memory_space<vmem>>, vector<1x9x9x16xbf16>
    %6 = vector.shape_cast %5 : vector<1x9x9x16xbf16> to vector<9x9x16xbf16>
    %7 = vector.extract_strided_slice %6 {offsets = [0, 0, 0], sizes = [8, 8, 16], strides = [1, 1, 1]} : vector<9x9x16xbf16> to vector<8x8x16xbf16>
    %8 = vector.shape_cast %7 : vector<8x8x16xbf16> to vector<64x16xbf16>
    %c0_3 = arith.constant 0 : index
    %c0_4 = arith.constant 0 : index
    %c0_5 = arith.constant 0 : index
    %9 = vector.load %arg3[%c0_3, %c0_4, %c0_5] : memref<4x16x8xbf16, #tpu.memory_space<vmem>>, vector<1x16x8xbf16>
    %10 = vector.shape_cast %9 : vector<1x16x8xbf16> to vector<16x8xbf16>
    %cst = arith.constant dense<0.000000e+00> : vector<64x8xf32>
    %11 = tpu.matmul %8, %10, %cst {dimension_numbers = #tpu.dot_dimension_numbers<[1], [0], [0], [1], [0, 0, 1, 1], [], []>} : vector<64x16xbf16>, vector<16x8xbf16>, vector<64x8xf32> -> vector<64x8xf32>
    %12 = vector.extract_strided_slice %6 {offsets = [0, 1, 0], sizes = [8, 8, 16], strides = [1, 1, 1]} : vector<9x9x16xbf16> to vector<8x8x16xbf16>
    %13 = vector.shape_cast %12 : vector<8x8x16xbf16> to vector<64x16xbf16>
    %c1 = arith.constant 1 : index
    %c0_6 = arith.constant 0 : index
    %c0_7 = arith.constant 0 : index
    %14 = vector.load %arg3[%c1, %c0_6, %c0_7] : memref<4x16x8xbf16, #tpu.memory_space<vmem>>, vector<1x16x8xbf16>
    %15 = vector.shape_cast %14 : vector<1x16x8xbf16> to vector<16x8xbf16>
    %cst_8 = arith.constant dense<0.000000e+00> : vector<64x8xf32>
    %16 = tpu.matmul %13, %15, %cst_8 {dimension_numbers = #tpu.dot_dimension_numbers<[1], [0], [0], [1], [0, 0, 1, 1], [], []>} : vector<64x16xbf16>, vector<16x8xbf16>, vector<64x8xf32> -> vector<64x8xf32>
    %17 = arith.addf %11, %16 : vector<64x8xf32>
    %18 = vector.extract_strided_slice %6 {offsets = [1, 0, 0], sizes = [8, 8, 16], strides = [1, 1, 1]} : vector<9x9x16xbf16> to vector<8x8x16xbf16>
    %19 = vector.shape_cast %18 : vector<8x8x16xbf16> to vector<64x16xbf16>
    %c2 = arith.constant 2 : index
    %c0_9 = arith.constant 0 : index
    %c0_10 = arith.constant 0 : index
    %20 = vector.load %arg3[%c2, %c0_9, %c0_10] : memref<4x16x8xbf16, #tpu.memory_space<vmem>>, vector<1x16x8xbf16>
    %21 = vector.shape_cast %20 : vector<1x16x8xbf16> to vector<16x8xbf16>
    %cst_11 = arith.constant dense<0.000000e+00> : vector<64x8xf32>
    %22 = tpu.matmul %19, %21, %cst_11 {dimension_numbers = #tpu.dot_dimension_numbers<[1], [0], [0], [1], [0, 0, 1, 1], [], []>} : vector<64x16xbf16>, vector<16x8xbf16>, vector<64x8xf32> -> vector<64x8xf32>
    %23 = arith.addf %17, %22 : vector<64x8xf32>
    %24 = vector.extract_strided_slice %6 {offsets = [1, 1, 0], sizes = [8, 8, 16], strides = [1, 1, 1]} : vector<9x9x16xbf16> to vector<8x8x16xbf16>
    %25 = vector.shape_cast %24 : vector<8x8x16xbf16> to vector<64x16xbf16>
    %c3 = arith.constant 3 : index
    %c0_12 = arith.constant 0 : index
    %c0_13 = arith.constant 0 : index
    %26 = vector.load %arg3[%c3, %c0_12, %c0_13] : memref<4x16x8xbf16, #tpu.memory_space<vmem>>, vector<1x16x8xbf16>
    %27 = vector.shape_cast %26 : vector<1x16x8xbf16> to vector<16x8xbf16>
    %cst_14 = arith.constant dense<0.000000e+00> : vector<64x8xf32>
    %28 = tpu.matmul %25, %27, %cst_14 {dimension_numbers = #tpu.dot_dimension_numbers<[1], [0], [0], [1], [0, 0, 1, 1], [], []>} : vector<64x16xbf16>, vector<16x8xbf16>, vector<64x8xf32> -> vector<64x8xf32>
    %29 = arith.addf %23, %28 : vector<64x8xf32>
    %c0_15 = arith.constant 0 : index
    %c0_16 = arith.constant 0 : index
    %30 = vector.load %arg6[%c0_15, %c0_16] : memref<1x8xf32, #tpu.memory_space<vmem>>, vector<1x8xf32>
    %cst_17 = arith.constant dense<0.000000e+00> : vector<8xf32>
    %31 = vector.multi_reduction <add>, %29, %cst_17 [0] : vector<64x8xf32> to vector<8xf32>
    %32 = vector.shape_cast %31 : vector<8xf32> to vector<1x8xf32>
    %33 = arith.addf %30, %32 : vector<1x8xf32>
    %c0_18 = arith.constant 0 : index
    %c0_19 = arith.constant 0 : index
    %34 = vector.load %arg6[%c0_18, %c0_19] : memref<1x8xf32, #tpu.memory_space<vmem>>, vector<1x8xf32>
    tpu.vector_store %arg6[%c0_18, %c0_19], %33 {strides = array<i32>} : memref<1x8xf32, #tpu.memory_space<vmem>>, vector<1x8xf32>,
    %c0_20 = arith.constant 0 : index
    %c0_21 = arith.constant 0 : index
    %35 = vector.load %arg7[%c0_20, %c0_21] : memref<1x8xf32, #tpu.memory_space<vmem>>, vector<1x8xf32>
    %36 = arith.mulf %29, %29 : vector<64x8xf32>
    %cst_22 = arith.constant dense<0.000000e+00> : vector<8xf32>
    %37 = vector.multi_reduction <add>, %36, %cst_22 [0] : vector<64x8xf32> to vector<8xf32>
    %38 = vector.shape_cast %37 : vector<8xf32> to vector<1x8xf32>
    %39 = arith.addf %35, %38 : vector<1x8xf32>
    %c0_23 = arith.constant 0 : index
    %c0_24 = arith.constant 0 : index
    %40 = vector.load %arg7[%c0_23, %c0_24] : memref<1x8xf32, #tpu.memory_space<vmem>>, vector<1x8xf32>
    tpu.vector_store %arg7[%c0_23, %c0_24], %39 {strides = array<i32>} : memref<1x8xf32, #tpu.memory_space<vmem>>, vector<1x8xf32>,
    %41 = tpu.transpose %29, [1, 0] : vector<64x8xf32> -> vector<8x64xf32>
    %c0_25 = arith.constant 0 : index
    %c0_26 = arith.constant 0 : index
    %c0_27 = arith.constant 0 : index
    %42 = vector.load %arg4[%c0_25, %c0_26, %c0_27] : memref<1x8x64xf32, #tpu.memory_space<vmem>>, vector<1x8x64xf32>
    %43 = vector.shape_cast %42 : vector<1x8x64xf32> to vector<8x64xf32>
    %44 = vector.shape_cast %41 : vector<8x64xf32> to vector<1x8x64xf32>
    tpu.vector_store %arg4[%c0_25, %c0_26, %c0_27], %44 {strides = array<i32>} : memref<1x8x64xf32, #tpu.memory_space<vmem>>, vector<1x8x64xf32>,
    %c0_i32_28 = arith.constant 0 : i32
    %45 = arith.cmpi eq, %arg1, %c0_i32_28 : i32
    %46 = arith.extui %45 : i1 to i32
    %c0_i32_29 = arith.constant 0 : i32
    %47 = arith.cmpi ne, %46, %c0_i32_29 : i32
    scf.if %47 {
      %c0_30 = arith.constant 0 : index
      %c0_31 = arith.constant 0 : index
      %48 = vector.load %arg6[%c0_30, %c0_31] : memref<1x8xf32, #tpu.memory_space<vmem>>, vector<1x8xf32>
      %c0_32 = arith.constant 0 : index
      %c0_33 = arith.constant 0 : index
      %c0_34 = arith.constant 0 : index
      %49 = vector.load %arg5[%c0_32, %c0_33, %c0_34] : memref<1x2x8xf32, #tpu.memory_space<vmem>>, vector<1x1x8xf32>
      %50 = vector.shape_cast %49 : vector<1x1x8xf32> to vector<1x8xf32>
      %51 = vector.shape_cast %48 : vector<1x8xf32> to vector<1x1x8xf32>
      tpu.vector_store %arg5[%c0_32, %c0_33, %c0_34], %51 {strides = array<i32>} : memref<1x2x8xf32, #tpu.memory_space<vmem>>, vector<1x1x8xf32>,
      %c0_35 = arith.constant 0 : index
      %c0_36 = arith.constant 0 : index
      %52 = vector.load %arg7[%c0_35, %c0_36] : memref<1x8xf32, #tpu.memory_space<vmem>>, vector<1x8xf32>
      %c0_37 = arith.constant 0 : index
      %c1_38 = arith.constant 1 : index
      %c0_39 = arith.constant 0 : index
      %53 = vector.load %arg5[%c0_37, %c1_38, %c0_39] : memref<1x2x8xf32, #tpu.memory_space<vmem>>, vector<1x1x8xf32>
      %54 = vector.shape_cast %53 : vector<1x1x8xf32> to vector<1x8xf32>
      %55 = vector.shape_cast %52 : vector<1x8xf32> to vector<1x1x8xf32>
      tpu.vector_store %arg5[%c0_37, %c1_38, %c0_39], %55 {strides = array<i32>} : memref<1x2x8xf32, #tpu.memory_space<vmem>>, vector<1x1x8xf32>,
    } else {
    }
    return
  }
  func.func @transform_0(%arg0: i32, %arg1: i32) -> (i32, i32, i32, i32) {
    %c0_i32 = arith.constant 0 : i32
    %c0_i32_0 = arith.constant 0 : i32
    %c0_i32_1 = arith.constant 0 : i32
    %c0_i32_2 = arith.constant 0 : i32
    return %arg0, %c0_i32, %c0_i32_0, %c0_i32_1 : i32, i32, i32, i32
  }
  func.func @transform_1(%arg0: i32, %arg1: i32) -> (i32, i32, i32) {
    %c0_i32 = arith.constant 0 : i32
    %c0_i32_0 = arith.constant 0 : i32
    %c0_i32_1 = arith.constant 0 : i32
    %c0_i32_2 = arith.constant 0 : i32
    return %c0_i32, %c0_i32_0, %c0_i32_1 : i32, i32, i32
  }
  func.func @transform_2(%arg0: i32, %arg1: i32) -> (i32, i32, i32) {
    %c0_i32 = arith.constant 0 : i32
    %c0_i32_0 = arith.constant 0 : i32
    return %arg0, %c0_i32, %arg1 : i32, i32, i32
  }
  func.func @transform_3(%arg0: i32, %arg1: i32) -> (i32, i32, i32) {
    %c0_i32 = arith.constant 0 : i32
    %c0_i32_0 = arith.constant 0 : i32
    %c0_i32_1 = arith.constant 0 : i32
    return %arg0, %c0_i32, %c0_i32_0 : i32, i32, i32
  }
}

module attributes {stable_mosaic.version = 11 : i64} {
  func.func @_bn_act_kernel(%arg0: i32, %arg1: i32, %arg2: memref<1x8x64xf32, #tpu.memory_space<vmem>>, %arg3: memref<8x1xf32, #tpu.memory_space<vmem>>, %arg4: memref<8x1xf32, #tpu.memory_space<vmem>>, %arg5: memref<1x8x64xf32, #tpu.memory_space<vmem>>) attributes {dimension_semantics = [#tpu.dimension_semantics<parallel>, #tpu.dimension_semantics<parallel>], iteration_bounds = array<i64: 2, 1>, scalar_prefetch = 0 : i64, scratch_operands = 0 : i64, tpu.core_type = #tpu.core_type<tc>, window_params = [{transform_indices = @transform_0, window_bounds = array<i64: 1, 8, 64>}, {pipeline_mode = #tpu.pipeline_mode<synchronous>, transform_indices = @transform_1, window_bounds = array<i64: 8, 1>}, {pipeline_mode = #tpu.pipeline_mode<synchronous>, transform_indices = @transform_2, window_bounds = array<i64: 8, 1>}, {transform_indices = @transform_3, window_bounds = array<i64: 1, 8, 64>}]} {
    %c0 = arith.constant 0 : index
    %c0_0 = arith.constant 0 : index
    %c0_1 = arith.constant 0 : index
    %0 = vector.load %arg2[%c0, %c0_0, %c0_1] : memref<1x8x64xf32, #tpu.memory_space<vmem>>, vector<1x8x64xf32>
    %1 = vector.shape_cast %0 : vector<1x8x64xf32> to vector<8x64xf32>
    %c0_2 = arith.constant 0 : index
    %c0_3 = arith.constant 0 : index
    %2 = vector.load %arg3[%c0_2, %c0_3] : memref<8x1xf32, #tpu.memory_space<vmem>>, vector<8x1xf32>
    %3 = vector.broadcast %2 : vector<8x1xf32> to vector<8x64xf32>
    %4 = arith.mulf %1, %3 : vector<8x64xf32>
    %c0_4 = arith.constant 0 : index
    %c0_5 = arith.constant 0 : index
    %5 = vector.load %arg4[%c0_4, %c0_5] : memref<8x1xf32, #tpu.memory_space<vmem>>, vector<8x1xf32>
    %6 = vector.broadcast %5 : vector<8x1xf32> to vector<8x64xf32>
    %7 = arith.addf %4, %6 : vector<8x64xf32>
    %cst = arith.constant 0.000000e+00 : f32
    %8 = vector.broadcast %cst : f32 to vector<8x64xf32>
    %9 = arith.cmpf oge, %7, %8 : vector<8x64xf32>
    %cst_6 = arith.constant 2.000000e-01 : f32
    %10 = vector.broadcast %cst_6 : f32 to vector<8x64xf32>
    %11 = arith.mulf %10, %7 : vector<8x64xf32>
    %12 = arith.select %9, %7, %11 : vector<8x64xi1>, vector<8x64xf32>
    %c0_7 = arith.constant 0 : index
    %c0_8 = arith.constant 0 : index
    %c0_9 = arith.constant 0 : index
    %13 = vector.load %arg5[%c0_7, %c0_8, %c0_9] : memref<1x8x64xf32, #tpu.memory_space<vmem>>, vector<1x8x64xf32>
    %14 = vector.shape_cast %13 : vector<1x8x64xf32> to vector<8x64xf32>
    %15 = vector.shape_cast %12 : vector<8x64xf32> to vector<1x8x64xf32>
    tpu.vector_store %arg5[%c0_7, %c0_8, %c0_9], %15 {strides = array<i32>} : memref<1x8x64xf32, #tpu.memory_space<vmem>>, vector<1x8x64xf32>,
    return
  }
  func.func @transform_0(%arg0: i32, %arg1: i32) -> (i32, i32, i32) {
    %c0_i32 = arith.constant 0 : i32
    %c0_i32_0 = arith.constant 0 : i32
    return %arg0, %c0_i32, %arg1 : i32, i32, i32
  }
  func.func @transform_1(%arg0: i32, %arg1: i32) -> (i32, i32) {
    %c0_i32 = arith.constant 0 : i32
    %c0_i32_0 = arith.constant 0 : i32
    %c0_i32_1 = arith.constant 0 : i32
    return %c0_i32, %c0_i32_0 : i32, i32
  }
  func.func @transform_2(%arg0: i32, %arg1: i32) -> (i32, i32) {
    %c0_i32 = arith.constant 0 : i32
    %c0_i32_0 = arith.constant 0 : i32
    %c0_i32_1 = arith.constant 0 : i32
    return %c0_i32, %c0_i32_0 : i32, i32
  }
  func.func @transform_3(%arg0: i32, %arg1: i32) -> (i32, i32, i32) {
    %c0_i32 = arith.constant 0 : i32
    %c0_i32_0 = arith.constant 0 : i32
    return %arg0, %c0_i32, %arg1 : i32, i32, i32
  }
}

</mosaic_0001>

<llo_original>
// kernel: downsample_conv.3
$region0: #{downsample_conv.3}
  #allocation0 [shape = 'u32[]', space=smem, size = 0x4, offset = 0x4, fixed_abs, tag = 'smem constant byte address 0x4 - core index']
  #allocation1 [shape = 'u32[144,128]{1,0:T(1,128)}', space=vmem, size = 0x12000, scoped, tag = 'internal scratch']
  %s0 = inlined_call_operand.vmem [shape: f32[2,8,64], index: 0, kind: input, shape index: {}, may-alias: {0,3}]
  %s1 = inlined_call_operand.vmem [shape: f32[8,1], index: 1, kind: input, shape index: {}]
  %s2 = inlined_call_operand.vmem [shape: f32[8,1], index: 2, kind: input, shape index: {}]
  %s3 = inlined_call_operand.vmem [shape: f32[2,8,64], index: 3, kind: output, shape index: {}, may-alias: {0,3}]
  %s4 = sld [smem:[#allocation0]]
  $region45: #{downsample_conv.3} parent=0
    _
  %s6 = ssub.s32 1, %s4
  %s7 = scalar_select 0, %s6, %s4
  loop: start=0, step=1, limit=4
  $region2: #{downsample_conv.3} parent=0 // loop_pre_header
    _
  $region3: #{downsample_conv.3} parent=0 // loop_header
    %s9 = sphi 0, %s13
    %p10 = scmp.ge.s32.totalorder %s9, 4
    %s16 = sphi 0, %s28
    %s17 = sphi 0, %s24
    %s18 = sphi 0, %s16
    %s19 = sphi 0, %s17
    %s20 = sphi 0, %s18
    %s21 = sphi 0, %s19
    %s33 = sphi 0, %s35
    %s36 = sphi 0, %s33
    %s37 = sphi 0, %s36
    %s53 = sphi 0, %s37
    %s57 = sphi 0, %s57
    %s59 = sphi 0, %s57
    %s60 = sphi 0, %s59
    %s74 = sphi 0, %s60
    %s78 = sphi 0, %s78
    %s80 = sphi 0, %s78
    %s81 = sphi 0, %s80
    %s95 = sphi 0, %s81
    %s103 = sphi 0, %s105
    %s106 = sphi 0, %s103
    %s107 = sphi 0, %s106
    %s123 = sphi 0, %s107
  $region4: #{downsample_conv.3} parent=0 // loop_header_branch
    %12 = sbr.rel (%p10) target = $region8
  $region5: #{downsample_conv.3} parent=0 // loop_body
    %s14 = ssub.s32 %s9, 1
    %s15 = ssub.s32 %s9, 2
    %s22 = sadd.s32 1, %s17
    %p23 = scmp.ge.s32.totalorder %s22, 1
    %s24 = scalar_select %p23, 0, %s22
    %s25 = sadd.s32 1, %s16
    %s26 = scalar_select %p23, %s25, %s16
    %p27 = scmp.ge.s32.totalorder %s26, 2
    %s28 = scalar_select %p27, 0, %s26
    %s29 = ssub.s32 %s16, %s28
    %s30 = ssub.s32 %s17, %s24
    %s31 = sor.u32 %s29, %s30
    %p32 = scmp.eq.s32.totalorder %s31, 0
    %s34 = sadd.s32 %s33, 1
    %s35 = scalar_select %p32, %s33, %s34
    %p38 = pneg %p32
    %p39 = scmp.eq.s32.totalorder %s9, 1
    %p40 = por %p38, %p39
    %p41 = scmp.ne.s32.totalorder %s33, %s36
    %p42 = scmp.eq.s32.totalorder %s9, 0
    %p43 = por %p41, %p42
    %p44 = scmp.ne.s32.totalorder %s33, %s36
    %p45 = scmp.eq.s32.totalorder %s14, 1
    %p46 = por %p44, %p45
    %p47 = scmp.ne.s32.totalorder %s36, %s37
    %p48 = scmp.eq.s32.totalorder %s14, 0
    %p49 = por %p47, %p48
    %p50 = scmp.ne.s32.totalorder %s36, %s37
    %p51 = scmp.eq.s32.totalorder %s15, 1
    %p52 = por %p50, %p51
    %p54 = scmp.ne.s32.totalorder %s37, %s53
    %p55 = scmp.eq.s32.totalorder %s15, 0
    %p56 = por %p54, %p55
    %s58 = sadd.s32 %s57, 1
    %p61 = scmp.eq.s32.totalorder %s9, 1
    %p62 = scmp.ne.s32.totalorder %s57, %s59
    %p63 = scmp.eq.s32.totalorder %s9, 0
    %p64 = por %p62, %p63
    %p65 = scmp.ne.s32.totalorder %s57, %s59
    %p66 = scmp.eq.s32.totalorder %s14, 1
    %p67 = por %p65, %p66
    %p68 = scmp.ne.s32.totalorder %s59, %s60
    %p69 = scmp.eq.s32.totalorder %s14, 0
    %p70 = por %p68, %p69
    %p71 = scmp.ne.s32.totalorder %s59, %s60
    %p72 = scmp.eq.s32.totalorder %s15, 1
    %p73 = por %p71, %p72
    %p75 = scmp.ne.s32.totalorder %s60, %s74
    %p76 = scmp.eq.s32.totalorder %s15, 0
    %p77 = por %p75, %p76
    %s79 = sadd.s32 %s78, 1
    %p82 = scmp.eq.s32.totalorder %s9, 1
    %p83 = scmp.ne.s32.totalorder %s78, %s80
    %p84 = scmp.eq.s32.totalorder %s9, 0
    %p85 = por %p83, %p84
    %p86 = scmp.ne.s32.totalorder %s78, %s80
    %p87 = scmp.eq.s32.totalorder %s14, 1
    %p88 = por %p86, %p87
    %p89 = scmp.ne.s32.totalorder %s80, %s81
    %p90 = scmp.eq.s32.totalorder %s14, 0
    %p91 = por %p89, %p90
    %p92 = scmp.ne.s32.totalorder %s80, %s81
    %p93 = scmp.eq.s32.totalorder %s15, 1
    %p94 = por %p92, %p93
    %p96 = scmp.ne.s32.totalorder %s81, %s95
    %p97 = scmp.eq.s32.totalorder %s15, 0
    %p98 = por %p96, %p97
    %s99 = ssub.s32 %s16, %s28
    %s100 = ssub.s32 %s17, %s24
    %s101 = sor.u32 %s99, %s100
    %p102 = scmp.eq.s32.totalorder %s101, 0
    %s104 = sadd.s32 %s103, 1
    %s105 = scalar_select %p102, %s103, %s104
    %p108 = pneg %p102
    %p109 = scmp.eq.s32.totalorder %s9, 1
    %p110 = por %p108, %p109
    %p111 = scmp.ne.s32.totalorder %s103, %s106
    %p112 = scmp.eq.s32.totalorder %s9, 0
    %p113 = por %p111, %p112
    %p114 = scmp.ne.s32.totalorder %s103, %s106
    %p115 = scmp.eq.s32.totalorder %s14, 1
    %p116 = por %p114, %p115
    %p117 = scmp.ne.s32.totalorder %s106, %s107
    %p118 = scmp.eq.s32.totalorder %s14, 0
    %p119 = por %p117, %p118
    %p120 = scmp.ne.s32.totalorder %s106, %s107
    %p121 = scmp.eq.s32.totalorder %s15, 1
    %p122 = por %p120, %p121
    %p124 = scmp.ne.s32.totalorder %s107, %s123
    %p125 = scmp.eq.s32.totalorder %s15, 0
    %p126 = por %p124, %p125
    %p127 = scmp.le.s32.totalorder 1, %s9
    %p128 = scmp.lt.s32.totalorder %s9, 3
    %p129 = pnand %p127, %p128
    %p130 = pneg %p129
    // Predicated region
    $region9: #{downsample_conv.3} parent=5 // pred_check
      _
    $region10: #{downsample_conv.3} parent=5 // pred_check_branch
      %132 = sbr.rel (%p129) target = $region12
    $region11: #{downsample_conv.3} parent=5 // pred_region
      %s133 = ssub.s32 %s9, 1
      // Predicated region
      $region13: #{downsample_conv.3} parent=11 // pred_check
        %p134 = pneg %p70
      $region14: #{downsample_conv.3} parent=11 // pred_check_branch
        %136 = sbr.rel (%p134) target = $region16
      $region15: #{downsample_conv.3} parent=11 // pred_region
        _
      $region16: #{downsample_conv.3} parent=11 // pred_fallthru
        _
      // Predicated region
      $region17: #{downsample_conv.3} parent=11 // pred_check
        %p137 = pneg %p91
      $region18: #{downsample_conv.3} parent=11 // pred_check_branch
        %139 = sbr.rel (%p137) target = $region20
      $region19: #{downsample_conv.3} parent=11 // pred_region
        _
      $region20: #{downsample_conv.3} parent=11 // pred_fallthru
        _
    $region12: #{downsample_conv.3} parent=5 // pred_fallthru
      _
    %p140 = scmp.lt.s32.totalorder %s9, 2
    // Predicated region
    $region21: #{downsample_conv.3} parent=5 // pred_check
      %p141 = pneg %p140
    $region22: #{downsample_conv.3} parent=5 // pred_check_branch
      %143 = sbr.rel (%p141) target = $region24
    $region23: #{downsample_conv.3} parent=5 // pred_region
      // Predicated region
      $region25: #{downsample_conv.3} parent=23 // pred_check
        %p144 = pneg %p43
      $region26: #{downsample_conv.3} parent=23 // pred_check_branch
        %146 = sbr.rel (%p144) target = $region28
      $region27: #{downsample_conv.3} parent=23 // pred_region
        %p147 = scmp.lt.s32.totalorder %s16, 1
        %s148 = scalar_select %p147, %s16, 1
        %p149 = scmp.lt.s32.totalorder %s17, 0
        %s150 = scalar_select %p149, %s17, 0
        %s151 = sadd.s32 %s150, %s148
        %s152 = smul.addr %s151, 8
        %s153 = scalar_lea.vmem %s0, %s152
      $region28: #{downsample_conv.3} parent=23 // pred_fallthru
        _
    $region24: #{downsample_conv.3} parent=5 // pred_fallthru
      _
    %p154 = scmp.le.s32.totalorder 1, %s9
    %p155 = scmp.lt.s32.totalorder %s9, 3
    %p156 = pnand %p154, %p155
    %p157 = pneg %p156
    // Predicated region
    $region29: #{downsample_conv.3} parent=5 // pred_check
      _
    $region30: #{downsample_conv.3} parent=5 // pred_check_branch
      %159 = sbr.rel (%p156) target = $region32
    $region31: #{downsample_conv.3} parent=5 // pred_region
      %s160 = ssub.s32 %s9, 1
      %p161 = scmp.lt.s32.totalorder %s18, 1
      %s162 = scalar_select %p161, %s18, 1
      %p163 = scmp.lt.s32.totalorder %s19, 0
      %s164 = scalar_select %p163, %s19, 0
      %s165 = sadd.s32 %s164, %s162
      %s166 = smul.addr %s165, 8
      %s167 = scalar_lea.vmem %s0, %s166
      %p168 = pneg %p49
      %p169 = pneg %p46
      %p170 = pneg %p70
      %p171 = pneg %p67
      %p172 = pneg %p91
      %p173 = pneg %p88
      %p174 = pneg %p119
      %p175 = pneg %p116
      %p176 = scmp.lt.s32.totalorder %s18, 1
      %s177 = scalar_select %p176, %s18, 1
      %p178 = scmp.lt.s32.totalorder %s19, 0
      %s179 = scalar_select %p178, %s19, 0
      %s180 = sadd.s32 %s179, %s177
      %s181 = smul.addr %s180, 8
      %s182 = scalar_lea.vmem %s3, %s181
      %p183 = scmp.lt.s32.totalorder %s18, 1
      %s184 = scalar_select %p183, %s18, 1
      %p185 = scmp.lt.s32.totalorder %s19, 0
      %s186 = scalar_select %p185, %s19, 0
      %s187 = sadd.s32 %s186, %s184
      %s188 = smul.addr %s187, 8
      %s189 = scalar_lea.vmem %s0, %s188
      %p190 = scmp.lt.s32.totalorder %s18, 1
      %s191 = scalar_select %p190, %s18, 1
      %p192 = scmp.lt.s32.totalorder %s19, 0
      %s193 = scalar_select %p192, %s19, 0
      %s194 = sadd.s32 %s193, %s191
      %s195 = smul.addr %s194, 8
      %s196 = scalar_lea.vmem %s3, %s195
      %v197 = vld [vmem:[%s189] sm:$0xff]
      %v198 = vld [vmem:[%s1] sm:$0xff]
      %200 = vset.pattern.permute.xlu0 0
      %201 = vperm.xlu0 %200, %v198
      %v202 = vpop.permute.xlu0 %201
      %v204 = vmul.f32 %v197, %v202
      %v205 = vld [vmem:[%s2] sm:$0xff]
      %207 = vset.pattern.permute.xlu0 0
      %208 = vperm.xlu0 %207, %v205
      %v209 = vpop.permute.xlu0 %208
      %v211 = vadd.f32 %v204, %v209
      %vm212 = vcmp.ge.f32.partialorder %v211, 0.0
      %v213 = vmul.f32 %v211, 0.2
      %v214 = vsel %vm212, %v211, %v213
      %vm215 = vcmask 523264
      %216 = vst.msk [vmem:[%s196] sm:$0xff] %vm215, %v214
      %p217 = scmp.lt.s32.totalorder %s18, 1
      %s218 = scalar_select %p217, %s18, 1
      %p219 = scmp.lt.s32.totalorder %s19, 0
      %s220 = scalar_select %p219, %s19, 0
      %s221 = sadd.s32 %s220, %s218
      %s222 = smul.addr %s221, 8
      %s223 = scalar_lea.vmem %s3, %s222
      // Predicated region
      $region33: #{downsample_conv.3} parent=31 // pred_check
        %p224 = pneg %p116
      $region34: #{downsample_conv.3} parent=31 // pred_check_branch
        %226 = sbr.rel (%p224) target = $region36
      $region35: #{downsample_conv.3} parent=31 // pred_region
        _
      $region36: #{downsample_conv.3} parent=31 // pred_fallthru
        _
    $region32: #{downsample_conv.3} parent=5 // pred_fallthru
      _
    %p227 = scmp.le.s32.totalorder 2, %s9
    // Predicated region
    $region37: #{downsample_conv.3} parent=5 // pred_check
      %p228 = pneg %p227
    $region38: #{downsample_conv.3} parent=5 // pred_check_branch
      %230 = sbr.rel (%p228) target = $region40
    $region39: #{downsample_conv.3} parent=5 // pred_region
      %s231 = ssub.s32 %s9, 2
      // Predicated region
      $region41: #{downsample_conv.3} parent=39 // pred_check
        %p232 = pneg %p122
      $region42: #{downsample_conv.3} parent=39 // pred_check_branch
        %234 = sbr.rel (%p232) target = $region44
      $region43: #{downsample_conv.3} parent=39 // pred_region
        %p235 = scmp.lt.s32.totalorder %s20, 1
        %s236 = scalar_select %p235, %s20, 1
        %p237 = scmp.lt.s32.totalorder %s21, 0
        %s238 = scalar_select %p237, %s21, 0
        %s239 = sadd.s32 %s238, %s236
        %s240 = smul.addr %s239, 8
        %s241 = scalar_lea.vmem %s3, %s240
      $region44: #{downsample_conv.3} parent=39 // pred_fallthru
        _
    $region40: #{downsample_conv.3} parent=5 // pred_fallthru
      _
  $region6: #{downsample_conv.3} parent=0 // loop_footer
    %s13 = sadd.s32 1, %s9
  $region7: #{downsample_conv.3} parent=0 // loop_footer_branch
    %8 = sbr.rel target = $region3
  $region8: #{downsample_conv.3} parent=0 // loop_exit
    _

// kernel: downsample_conv.2
$region0: #{downsample_conv.2}
  #allocation0 [shape = 'u32[]', space=smem, size = 0x4, offset = 0x4, fixed_abs, tag = 'smem constant byte address 0x4 - core index']
  #allocation1 [shape = 'u32[144,128]{1,0:T(1,128)}', space=vmem, size = 0x12000, scoped, tag = 'internal scratch']
  #allocation2 [shape = 'f32[1,8]{1,0:T(1,128)}', space=vmem, size = 0x200, scoped, tag = 'scratch operand']
  #allocation3 [shape = 'f32[1,8]{1,0:T(1,128)}', space=vmem, size = 0x200, scoped, tag = 'scratch operand']
  %s0 = inlined_call_operand.vmem [shape: bf16[2,9,9,16], index: 0, kind: input, shape index: {}]
  %s1 = inlined_call_operand.vmem [shape: bf16[4,16,8], index: 1, kind: input, shape index: {}]
  %s2 = inlined_call_operand.vmem [shape: f32[2,8,64], index: 2, kind: output, shape index: {0}]
  %s3 = inlined_call_operand.vmem [shape: f32[2,2,8], index: 3, kind: output, shape index: {1}]
  %4 = xla_tuple %s2, %s3
  %s5 = sld [smem:[#allocation0]]
  $region57: #{downsample_conv.2} parent=0
    _
  %s7 = ssub.s32 1, %s5
  %s8 = scalar_select 0, %s7, %s5
  loop: start=0, step=1, limit=4
  $region2: #{downsample_conv.2} parent=0 // loop_pre_header
    _
  $region3: #{downsample_conv.2} parent=0 // loop_header
    %s10 = sphi 0, %s14
    %p11 = scmp.ge.s32.totalorder %s10, 4
    %s17 = sphi 0, %s29
    %s18 = sphi 0, %s25
    %s19 = sphi 0, %s17
    %s20 = sphi 0, %s18
    %s21 = sphi 0, %s19
    %s22 = sphi 0, %s20
    %s32 = sphi 0, %s34
    %s35 = sphi 0, %s32
    %s36 = sphi 0, %s35
    %s52 = sphi 0, %s36
    %s56 = sphi 0, %s56
    %s58 = sphi 0, %s56
    %s59 = sphi 0, %s58
    %s73 = sphi 0, %s59
    %s81 = sphi 0, %s83
    %s84 = sphi 0, %s81
    %s85 = sphi 0, %s84
    %s101 = sphi 0, %s85
    %s107 = sphi 0, %s109
    %s110 = sphi 0, %s107
    %s111 = sphi 0, %s110
    %s127 = sphi 0, %s111
  $region4: #{downsample_conv.2} parent=0 // loop_header_branch
    %13 = sbr.rel (%p11) target = $region8
  $region5: #{downsample_conv.2} parent=0 // loop_body
    %s15 = ssub.s32 %s10, 1
    %s16 = ssub.s32 %s10, 2
    %s23 = sadd.s32 1, %s18
    %p24 = scmp.ge.s32.totalorder %s23, 1
    %s25 = scalar_select %p24, 0, %s23
    %s26 = sadd.s32 1, %s17
    %s27 = scalar_select %p24, %s26, %s17
    %p28 = scmp.ge.s32.totalorder %s27, 2
    %s29 = scalar_select %p28, 0, %s27
    %s30 = ssub.s32 %s17, %s29
    %p31 = scmp.eq.s32.totalorder %s30, 0
    %s33 = sadd.s32 %s32, 1
    %s34 = scalar_select %p31, %s32, %s33
    %p37 = pneg %p31
    %p38 = scmp.eq.s32.totalorder %s10, 1
    %p39 = por %p37, %p38
    %p40 = scmp.ne.s32.totalorder %s32, %s35
    %p41 = scmp.eq.s32.totalorder %s10, 0
    %p42 = por %p40, %p41
    %p43 = scmp.ne.s32.totalorder %s32, %s35
    %p44 = scmp.eq.s32.totalorder %s15, 1
    %p45 = por %p43, %p44
    %p46 = scmp.ne.s32.totalorder %s35, %s36
    %p47 = scmp.eq.s32.totalorder %s15, 0
    %p48 = por %p46, %p47
    %p49 = scmp.ne.s32.totalorder %s35, %s36
    %p50 = scmp.eq.s32.totalorder %s16, 1
    %p51 = por %p49, %p50
    %p53 = scmp.ne.s32.totalorder %s36, %s52
    %p54 = scmp.eq.s32.totalorder %s16, 0
    %p55 = por %p53, %p54
    %s57 = sadd.s32 %s56, 1
    %p60 = scmp.eq.s32.totalorder %s10, 1
    %p61 = scmp.ne.s32.totalorder %s56, %s58
    %p62 = scmp.eq.s32.totalorder %s10, 0
    %p63 = por %p61, %p62
    %p64 = scmp.ne.s32.totalorder %s56, %s58
    %p65 = scmp.eq.s32.totalorder %s15, 1
    %p66 = por %p64, %p65
    %p67 = scmp.ne.s32.totalorder %s58, %s59
    %p68 = scmp.eq.s32.totalorder %s15, 0
    %p69 = por %p67, %p68
    %p70 = scmp.ne.s32.totalorder %s58, %s59
    %p71 = scmp.eq.s32.totalorder %s16, 1
    %p72 = por %p70, %p71
    %p74 = scmp.ne.s32.totalorder %s59, %s73
    %p75 = scmp.eq.s32.totalorder %s16, 0
    %p76 = por %p74, %p75
    %s77 = ssub.s32 %s17, %s29
    %s78 = ssub.s32 %s18, %s25
    %s79 = sor.u32 %s77, %s78
    %p80 = scmp.eq.s32.totalorder %s79, 0
    %s82 = sadd.s32 %s81, 1
    %s83 = scalar_select %p80, %s81, %s82
    %p86 = pneg %p80
    %p87 = scmp.eq.s32.totalorder %s10, 1
    %p88 = por %p86, %p87
    %p89 = scmp.ne.s32.totalorder %s81, %s84
    %p90 = scmp.eq.s32.totalorder %s10, 0
    %p91 = por %p89, %p90
    %p92 = scmp.ne.s32.totalorder %s81, %s84
    %p93 = scmp.eq.s32.totalorder %s15, 1
    %p94 = por %p92, %p93
    %p95 = scmp.ne.s32.totalorder %s84, %s85
    %p96 = scmp.eq.s32.totalorder %s15, 0
    %p97 = por %p95, %p96
    %p98 = scmp.ne.s32.totalorder %s84, %s85
    %p99 = scmp.eq.s32.totalorder %s16, 1
    %p100 = por %p98, %p99
    %p102 = scmp.ne.s32.totalorder %s85, %s101
    %p103 = scmp.eq.s32.totalorder %s16, 0
    %p104 = por %p102, %p103
    %s105 = ssub.s32 %s17, %s29
    %p106 = scmp.eq.s32.totalorder %s105, 0
    %s108 = sadd.s32 %s107, 1
    %s109 = scalar_select %p106, %s107, %s108
    %p112 = pneg %p106
    %p113 = scmp.eq.s32.totalorder %s10, 1
    %p114 = por %p112, %p113
    %p115 = scmp.ne.s32.totalorder %s107, %s110
    %p116 = scmp.eq.s32.totalorder %s10, 0
    %p117 = por %p115, %p116
    %p118 = scmp.ne.s32.totalorder %s107, %s110
    %p119 = scmp.eq.s32.totalorder %s15, 1
    %p120 = por %p118, %p119
    %p121 = scmp.ne.s32.totalorder %s110, %s111
    %p122 = scmp.eq.s32.totalorder %s15, 0
    %p123 = por %p121, %p122
    %p124 = scmp.ne.s32.totalorder %s110, %s111
    %p125 = scmp.eq.s32.totalorder %s16, 1
    %p126 = por %p124, %p125
    %p128 = scmp.ne.s32.totalorder %s111, %s127
    %p129 = scmp.eq.s32.totalorder %s16, 0
    %p130 = por %p128, %p129
    %p131 = scmp.le.s32.totalorder 1, %s10
    %p132 = scmp.lt.s32.totalorder %s10, 3
    %p133 = pnand %p131, %p132
    %p134 = pneg %p133
    // Predicated region
    $region9: #{downsample_conv.2} parent=5 // pred_check
      _
    $region10: #{downsample_conv.2} parent=5 // pred_check_branch
      %136 = sbr.rel (%p133) target = $region12
    $region11: #{downsample_conv.2} parent=5 // pred_region
      %s137 = ssub.s32 %s10, 1
      // Predicated region
      $region13: #{downsample_conv.2} parent=11 // pred_check
        %p138 = pneg %p69
      $region14: #{downsample_conv.2} parent=11 // pred_check_branch
        %140 = sbr.rel (%p138) target = $region16
      $region15: #{downsample_conv.2} parent=11 // pred_region
        _
      $region16: #{downsample_conv.2} parent=11 // pred_fallthru
        _
    $region12: #{downsample_conv.2} parent=5 // pred_fallthru
      _
    %p141 = scmp.lt.s32.totalorder %s10, 2
    // Predicated region
    $region17: #{downsample_conv.2} parent=5 // pred_check
      %p142 = pneg %p141
    $region18: #{downsample_conv.2} parent=5 // pred_check_branch
      %144 = sbr.rel (%p142) target = $region20
    $region19: #{downsample_conv.2} parent=5 // pred_region
      // Predicated region
      $region21: #{downsample_conv.2} parent=19 // pred_check
        %p145 = pneg %p42
      $region22: #{downsample_conv.2} parent=19 // pred_check_branch
        %147 = sbr.rel (%p145) target = $region24
      $region23: #{downsample_conv.2} parent=19 // pred_region
        %p148 = scmp.lt.s32.totalorder %s17, 1
        %s149 = scalar_select %p148, %s17, 1
        %s150 = smul.addr %s149, 18
        %s151 = smul.addr %s150, 4
        %s152 = scalar_lea.vmem %s0, %s151
      $region24: #{downsample_conv.2} parent=19 // pred_fallthru
        _
    $region20: #{downsample_conv.2} parent=5 // pred_fallthru
      _
    %p153 = scmp.le.s32.totalorder 1, %s10
    %p154 = scmp.lt.s32.totalorder %s10, 3
    %p155 = pnand %p153, %p154
    %p156 = pneg %p155
    // Predicated region
    $region25: #{downsample_conv.2} parent=5 // pred_check
      _
    $region26: #{downsample_conv.2} parent=5 // pred_check_branch
      %158 = sbr.rel (%p155) target = $region28
    $region27: #{downsample_conv.2} parent=5 // pred_region
      %s159 = ssub.s32 %s10, 1
      %p160 = scmp.lt.s32.totalorder %s19, 1
      %s161 = scalar_select %p160, %s19, 1
      %s162 = smul.addr %s161, 18
      %s163 = smul.addr %s162, 4
      %s164 = scalar_lea.vmem %s0, %s163
      %p165 = pneg %p48
      %p166 = pneg %p45
      %p167 = pneg %p69
      %p168 = pneg %p66
      %p169 = pneg %p97
      %p170 = pneg %p94
      %p171 = scmp.lt.s32.totalorder %s19, 1
      %s172 = scalar_select %p171, %s19, 1
      %p173 = scmp.lt.s32.totalorder %s20, 0
      %s174 = scalar_select %p173, %s20, 0
      %s175 = sadd.s32 %s174, %s172
      %s176 = smul.addr %s175, 8
      %s177 = scalar_lea.vmem %s2, %s176
      %p178 = pneg %p123
      %p179 = pneg %p120
      %p180 = scmp.lt.s32.totalorder %s19, 1
      %s181 = scalar_select %p180, %s19, 1
      %s182 = smul.addr %s181, 2
      %s183 = scalar_lea.vmem %s3, %s182
      %p184 = scmp.lt.s32.totalorder %s19, 1
      %s185 = scalar_select %p184, %s19, 1
      %s186 = smul.addr %s185, 18
      %s187 = smul.addr %s186, 4
      %s188 = scalar_lea.vmem %s0, %s187
      %p189 = scmp.lt.s32.totalorder %s19, 1
      %s190 = scalar_select %p189, %s19, 1
      %p191 = scmp.lt.s32.totalorder %s20, 0
      %s192 = scalar_select %p191, %s20, 0
      %s193 = sadd.s32 %s192, %s190
      %s194 = smul.addr %s193, 8
      %s195 = scalar_lea.vmem %s2, %s194
      %p196 = scmp.lt.s32.totalorder %s19, 1
      %s197 = scalar_select %p196, %s19, 1
      %s198 = smul.addr %s197, 2
      %s199 = scalar_lea.vmem %s3, %s198
      %p201 = scmp.eq.s32.totalorder %s20, 0
      // Predicated region
      $region29: #{downsample_conv.2} parent=27 // pred_check
        %p202 = pneg %p201
      $region30: #{downsample_conv.2} parent=27 // pred_check_branch
        %204 = sbr.rel (%p202) target = $region32
      $region31: #{downsample_conv.2} parent=27 // pred_region
        %vm205 = vcmask 57344
        %206 = vst.msk [vmem:[#allocation2] sm:$0x1] %vm205, 0.0
        %207 = vst.msk [vmem:[#allocation3] sm:$0x1] %vm205, 0.0
      $region32: #{downsample_conv.2} parent=27 // pred_fallthru
        _
      %s208 = smul.u32 %s20, 8
      %s209 = smul.u32 %s208, 2
      %s210 = smul.addr %s209, 4
      %s211 = scalar_lea.vmem %s188, %s210
      %v212 = vld [vmem:[%s211] sm:$0xf]
      %v213 = vld [vmem:[%s211 + $0x4] sm:$0x1]
      %v214 = vld [vmem:[%s211 + $0x8] sm:$0xf]
      %v215 = vld [vmem:[%s211 + $0xc] sm:$0x1]
      %v216 = vld [vmem:[%s211 + $0x10] sm:$0xf]
      %v217 = vld [vmem:[%s211 + $0x14] sm:$0x1]
      %v218 = vld [vmem:[%s211 + $0x18] sm:$0xf]
      %v219 = vld [vmem:[%s211 + $0x1c] sm:$0x1]
      %v220 = vld [vmem:[%s211 + $0x20] sm:$0xf]
      %v221 = vld [vmem:[%s211 + $0x24] sm:$0x1]
      %v222 = vld [vmem:[%s211 + $0x28] sm:$0xf]
      %v223 = vld [vmem:[%s211 + $0x2c] sm:$0x1]
      %v224 = vld [vmem:[%s211 + $0x30] sm:$0xf]
      %v225 = vld [vmem:[%s211 + $0x34] sm:$0x1]
      %v226 = vld [vmem:[%s211 + $0x38] sm:$0xf]
      %v227 = vld [vmem:[%s211 + $0x3c] sm:$0x1]
      %v228 = vld [vmem:[%s211 + $0x40] sm:$0xf]
      %v229 = vld [vmem:[%s211 + $0x44] sm:$0x1]
      %v230 = vld [vmem:[%s1] sm:$0xf]
      %v231 = vld [vmem:[%s1 + $0x4] sm:$0xf]
      %vm232 = vsmask.f32 3328
      %vm233 = vsmask.f32 7440
      %vm234 = vmor %vm232, %vm233
      %v236 = vshrl.u32 %v212, 16
      %v238 = vrot.slane %v236, 4
      %v239 = vshll.u32 %v212, 16
      %v241 = vrot.slane %v239, 5
      %v242 = vor.u32 %v238, %v241
      %v243 = vrot.slane %v242, 4
      %v245 = vshll.u32 %v213, 16
      %v247 = vrot.slane %v245, 5
      %v248 = vsel %vm234, %v243, %v247
      %v250 = vshrl.u32 %v214, 16
      %v252 = vrot.slane %v250, 4
      %v253 = vshll.u32 %v214, 16
      %v255 = vrot.slane %v253, 5
      %v256 = vor.u32 %v252, %v255
      %v257 = vrot.slane %v256, 4
      %v259 = vshll.u32 %v215, 16
      %v261 = vrot.slane %v259, 5
      %v262 = vsel %vm234, %v257, %v261
      %v264 = vshrl.u32 %v216, 16
      %v266 = vrot.slane %v264, 4
      %v267 = vshll.u32 %v216, 16
      %v269 = vrot.slane %v267, 5
      %v270 = vor.u32 %v266, %v269
      %v271 = vrot.slane %v270, 4
      %v273 = vshll.u32 %v217, 16
      %v275 = vrot.slane %v273, 5
      %v276 = vsel %vm234, %v271, %v275
      %v278 = vshrl.u32 %v218, 16
      %v280 = vrot.slane %v278, 4
      %v281 = vshll.u32 %v218, 16
      %v283 = vrot.slane %v281, 5
      %v284 = vor.u32 %v280, %v283
      %v285 = vrot.slane %v284, 4
      %v287 = vshll.u32 %v219, 16
      %v289 = vrot.slane %v287, 5
      %v290 = vsel %vm234, %v285, %v289
      %v292 = vshrl.u32 %v220, 16
      %v294 = vrot.slane %v292, 4
      %v295 = vshll.u32 %v220, 16
      %v297 = vrot.slane %v295, 5
      %v298 = vor.u32 %v294, %v297
      %v299 = vrot.slane %v298, 4
      %v301 = vshll.u32 %v221, 16
      %v303 = vrot.slane %v301, 5
      %v304 = vsel %vm234, %v299, %v303
      %v306 = vshrl.u32 %v222, 16
      %v308 = vrot.slane %v306, 4
      %v309 = vshll.u32 %v222, 16
      %v311 = vrot.slane %v309, 5
      %v312 = vor.u32 %v308, %v311
      %v313 = vrot.slane %v312, 4
      %v315 = vshll.u32 %v223, 16
      %v317 = vrot.slane %v315, 5
      %v318 = vsel %vm234, %v313, %v317
      %v320 = vshrl.u32 %v224, 16
      %v322 = vrot.slane %v320, 4
      %v323 = vshll.u32 %v224, 16
      %v325 = vrot.slane %v323, 5
      %v326 = vor.u32 %v322, %v325
      %v327 = vrot.slane %v326, 4
      %v329 = vshll.u32 %v225, 16
      %v331 = vrot.slane %v329, 5
      %v332 = vsel %vm234, %v327, %v331
      %v334 = vshrl.u32 %v226, 16
      %v336 = vrot.slane %v334, 4
      %v337 = vshll.u32 %v226, 16
      %v339 = vrot.slane %v337, 5
      %v340 = vor.u32 %v336, %v339
      %v341 = vrot.slane %v340, 4
      %v343 = vshll.u32 %v227, 16
      %v345 = vrot.slane %v343, 5
      %v346 = vsel %vm234, %v341, %v345
      %s347 = scalar_lea.vmem %s1, 8
      %v348 = vld [vmem:[%s347] sm:$0xf]
      %v349 = vld [vmem:[%s347 + $0x4] sm:$0xf]
      %v350 = vunpack.c.l.b16 %v248
      %v351 = vunpack.c.l.b16 %v262
      %v352 = vunpack.c.l.b16 %v276
      %v353 = vunpack.c.l.b16 %v290
      %v354 = vunpack.c.l.b16 %v304
      %v355 = vunpack.c.l.b16 %v318
      %v356 = vunpack.c.l.b16 %v332
      %v357 = vunpack.c.l.b16 %v346
      %v358 = vpack.c.b16 %v351, %v350
      %v359 = vpack.c.b16 %v353, %v352
      %v360 = vpack.c.b16 %v355, %v354
      %v361 = vpack.c.b16 %v357, %v356
      %v364 = vunpack.c.l.b16 %v348
      %v365 = vunpack.c.l.b16 %v349
      %v366 = vpack.c.b16 %v365, %v364
      %vm368 = vcmask 130048
      %v370 = vsel %vm368, %v358, 0
      %v373 = vsel %vm368, %v359, 0
      %v376 = vsel %vm368, %v360, 0
      %v379 = vsel %vm368, %v361, 0
      %381 = vmatprep.subr.bf16.mxu0 0
      %382 = vmatpush1.bf16.msra.mxu0 %v366
      %383 = vmatprep.subr.bf16.mxu0 0
      %384 = vmatpush1.bf16.msra.mxu0 0
      %385 = vmatprep.subr.bf16.mxu0 0
      %386 = vmatpush1.bf16.msra.mxu0 0
      %387 = vmatprep.subr.bf16.mxu0 0
      %388 = vmatpush1.bf16.msra.mxu0 0
      %389 = vmatprep.subr.bf16.mxu0 0
      %390 = vmatpush1.bf16.msra.mxu0 0
      %391 = vmatprep.subr.bf16.mxu0 0
      %392 = vmatpush1.bf16.msra.mxu0 0
      %393 = vmatprep.subr.bf16.mxu0 0
      %394 = vmatpush1.bf16.msra.mxu0 0
      %395 = vmatprep.subr.bf16.mxu0 0
      %396 = vmatpush1.bf16.msra.mxu0 0
      %397 = vmatprep.subr.bf16.mxu0 0
      %398 = vmatpush1.bf16.msra.mxu0 0
      %399 = vmatprep.subr.bf16.mxu0 0
      %400 = vmatpush1.bf16.msra.mxu0 0
      %401 = vmatprep.subr.bf16.mxu0 0
      %402 = vmatpush1.bf16.msra.mxu0 0
      %403 = vmatprep.subr.bf16.mxu0 0
      %404 = vmatpush1.bf16.msra.mxu0 0
      %405 = vmatprep.subr.bf16.mxu0 0
      %406 = vmatpush1.bf16.msra.mxu0 0
      %407 = vmatprep.subr.bf16.mxu0 0
      %408 = vmatpush1.bf16.msra.mxu0 0
      %409 = vmatprep.subr.bf16.mxu0 0
      %410 = vmatpush1.bf16.msra.mxu0 0
      %411 = vmatprep.subr.bf16.mxu0 0
      %412 = vmatpush1.bf16.msra.mxu0 0
      %413 = vmatprep.mubr.bf16.mxu0 0
      %414 = vmatmul.mubr.bf16.gmra.mrb[0].mxu0 %v370
      %v415 = vpop.f32.mrb[0].mxu0
      %v416 = vadd.f32 0.0, %v415
      %v417 = vpop.f32.mrb[0].mxu0
      %v418 = vpop.f32.mrb[0].mxu0
      %v419 = vadd.f32 0.0, %v418
      %v420 = vpop.f32.mrb[0].mxu0
      %421 = vmatprep.mubr.bf16.mxu0 0
      %422 = vmatmul.mubr.bf16.gmra.mrb[0].mxu0 %v373
      %v423 = vpop.f32.mrb[0].mxu0
      %v424 = vadd.f32 0.0, %v423
      %v425 = vpop.f32.mrb[0].mxu0
      %v426 = vpop.f32.mrb[0].mxu0
      %v427 = vadd.f32 0.0, %v426
      %v428 = vpop.f32.mrb[0].mxu0
      %429 = vmatprep.mubr.bf16.mxu0 0
      %430 = vmatmul.mubr.bf16.gmra.mrb[0].mxu0 %v376
      %v431 = vpop.f32.mrb[0].mxu0
      %v432 = vadd.f32 0.0, %v431
      %v433 = vpop.f32.mrb[0].mxu0
      %v434 = vpop.f32.mrb[0].mxu0
      %v435 = vadd.f32 0.0, %v434
      %v436 = vpop.f32.mrb[0].mxu0
      %437 = vmatprep.mubr.bf16.mxu0 0
      %438 = vmatmul.mubr.bf16.gmra.mrb[0].mxu0 %v379
      %v439 = vpop.f32.mrb[0].mxu0
      %v440 = vadd.f32 0.0, %v439
      %v441 = vpop.f32.mrb[0].mxu0
      %v442 = vpop.f32.mrb[0].mxu0
      %v443 = vadd.f32 0.0, %v442
      %v444 = vpop.f32.mrb[0].mxu0
      %445 = vdwg.mxu0
      %v454 = vunpack.c.l.b16 %v212
      %v455 = vunpack.c.l.b16 %v214
      %v456 = vunpack.c.l.b16 %v216
      %v457 = vunpack.c.l.b16 %v218
      %v458 = vunpack.c.l.b16 %v220
      %v459 = vunpack.c.l.b16 %v222
      %v460 = vunpack.c.l.b16 %v224
      %v461 = vunpack.c.l.b16 %v226
      %v462 = vpack.c.b16 %v455, %v454
      %v463 = vpack.c.b16 %v457, %v456
      %v464 = vpack.c.b16 %v459, %v458
      %v465 = vpack.c.b16 %v461, %v460
      %v468 = vunpack.c.l.b16 %v230
      %v469 = vunpack.c.l.b16 %v231
      %v470 = vpack.c.b16 %v469, %v468
      %v473 = vsel %vm368, %v462, 0
      %v476 = vsel %vm368, %v463, 0
      %v479 = vsel %vm368, %v464, 0
      %v482 = vsel %vm368, %v465, 0
      %484 = vmatprep.subr.bf16.mxu0 0
      %485 = vmatpush1.bf16.msra.mxu0 %v470
      %486 = vmatprep.subr.bf16.mxu0 0
      %487 = vmatpush1.bf16.msra.mxu0 0
      %488 = vmatprep.subr.bf16.mxu0 0
      %489 = vmatpush1.bf16.msra.mxu0 0
      %490 = vmatprep.subr.bf16.mxu0 0
      %491 = vmatpush1.bf16.msra.mxu0 0
      %492 = vmatprep.subr.bf16.mxu0 0
      %493 = vmatpush1.bf16.msra.mxu0 0
      %494 = vmatprep.subr.bf16.mxu0 0
      %495 = vmatpush1.bf16.msra.mxu0 0
      %496 = vmatprep.subr.bf16.mxu0 0
      %497 = vmatpush1.bf16.msra.mxu0 0
      %498 = vmatprep.subr.bf16.mxu0 0
      %499 = vmatpush1.bf16.msra.mxu0 0
      %500 = vmatprep.subr.bf16.mxu0 0
      %501 = vmatpush1.bf16.msra.mxu0 0
      %502 = vmatprep.subr.bf16.mxu0 0
      %503 = vmatpush1.bf16.msra.mxu0 0
      %504 = vmatprep.subr.bf16.mxu0 0
      %505 = vmatpush1.bf16.msra.mxu0 0
      %506 = vmatprep.subr.bf16.mxu0 0
      %507 = vmatpush1.bf16.msra.mxu0 0
      %508 = vmatprep.subr.bf16.mxu0 0
      %509 = vmatpush1.bf16.msra.mxu0 0
      %510 = vmatprep.subr.bf16.mxu0 0
      %511 = vmatpush1.bf16.msra.mxu0 0
      %512 = vmatprep.subr.bf16.mxu0 0
      %513 = vmatpush1.bf16.msra.mxu0 0
      %514 = vmatprep.subr.bf16.mxu0 0
      %515 = vmatpush1.bf16.msra.mxu0 0
      %516 = vmatprep.mubr.bf16.mxu0 0
      %517 = vmatmul.mubr.bf16.gmra.mrb[0].mxu0 %v473
      %v518 = vpop.f32.mrb[0].mxu0
      %v519 = vadd.f32 %v416, %v518
      %v520 = vpop.f32.mrb[0].mxu0
      %v521 = vpop.f32.mrb[0].mxu0
      %v522 = vadd.f32 %v419, %v521
      %v523 = vpop.f32.mrb[0].mxu0
      %524 = vmatprep.mubr.bf16.mxu0 0
      %525 = vmatmul.mubr.bf16.gmra.mrb[0].mxu0 %v476
      %v526 = vpop.f32.mrb[0].mxu0
      %v527 = vadd.f32 %v424, %v526
      %v528 = vpop.f32.mrb[0].mxu0
      %v529 = vpop.f32.mrb[0].mxu0
      %v530 = vadd.f32 %v427, %v529
      %v531 = vpop.f32.mrb[0].mxu0
      %532 = vmatprep.mubr.bf16.mxu0 0
      %533 = vmatmul.mubr.bf16.gmra.mrb[0].mxu0 %v479
      %v534 = vpop.f32.mrb[0].mxu0
      %v535 = vadd.f32 %v432, %v534
      %v536 = vpop.f32.mrb[0].mxu0
      %v537 = vpop.f32.mrb[0].mxu0
      %v538 = vadd.f32 %v435, %v537
      %v539 = vpop.f32.mrb[0].mxu0
      %540 = vmatprep.mubr.bf16.mxu0 0
      %541 = vmatmul.mubr.bf16.gmra.mrb[0].mxu0 %v482
      %v542 = vpop.f32.mrb[0].mxu0
      %v543 = vadd.f32 %v440, %v542
      %v544 = vpop.f32.mrb[0].mxu0
      %v545 = vpop.f32.mrb[0].mxu0
      %v546 = vadd.f32 %v443, %v545
      %v547 = vpop.f32.mrb[0].mxu0
      %548 = vdwg.mxu0
      %s549 = scalar_lea.vmem %s1, 16
      %v550 = vld [vmem:[%s549] sm:$0xf]
      %v551 = vld [vmem:[%s549 + $0x4] sm:$0xf]
      %v553 = vunpack.c.l.b16 %v228
      %v554 = vpack.c.b16 %v456, %v455
      %v555 = vpack.c.b16 %v458, %v457
      %v556 = vpack.c.b16 %v460, %v459
      %v557 = vpack.c.b16 %v553, %v461
      %v560 = vunpack.c.l.b16 %v550
      %v561 = vunpack.c.l.b16 %v551
      %v562 = vpack.c.b16 %v561, %v560
      %v565 = vsel %vm368, %v554, 0
      %v568 = vsel %vm368, %v555, 0
      %v571 = vsel %vm368, %v556, 0
      %v574 = vsel %vm368, %v557, 0
      %576 = vmatprep.subr.bf16.mxu0 0
      %577 = vmatpush1.bf16.msra.mxu0 %v562
      %578 = vmatprep.subr.bf16.mxu0 0
      %579 = vmatpush1.bf16.msra.mxu0 0
      %580 = vmatprep.subr.bf16.mxu0 0
      %581 = vmatpush1.bf16.msra.mxu0 0
      %582 = vmatprep.subr.bf16.mxu0 0
      %583 = vmatpush1.bf16.msra.mxu0 0
      %584 = vmatprep.subr.bf16.mxu0 0
      %585 = vmatpush1.bf16.msra.mxu0 0
      %586 = vmatprep.subr.bf16.mxu0 0
      %587 = vmatpush1.bf16.msra.mxu0 0
      %588 = vmatprep.subr.bf16.mxu0 0
      %589 = vmatpush1.bf16.msra.mxu0 0
      %590 = vmatprep.subr.bf16.mxu0 0
      %591 = vmatpush1.bf16.msra.mxu0 0
      %592 = vmatprep.subr.bf16.mxu0 0
      %593 = vmatpush1.bf16.msra.mxu0 0
      %594 = vmatprep.subr.bf16.mxu0 0
      %595 = vmatpush1.bf16.msra.mxu0 0
      %596 = vmatprep.subr.bf16.mxu0 0
      %597 = vmatpush1.bf16.msra.mxu0 0
      %598 = vmatprep.subr.bf16.mxu0 0
      %599 = vmatpush1.bf16.msra.mxu0 0
      %600 = vmatprep.subr.bf16.mxu0 0
      %601 = vmatpush1.bf16.msra.mxu0 0
      %602 = vmatprep.subr.bf16.mxu0 0
      %603 = vmatpush1.bf16.msra.mxu0 0
      %604 = vmatprep.subr.bf16.mxu0 0
      %605 = vmatpush1.bf16.msra.mxu0 0
      %606 = vmatprep.subr.bf16.mxu0 0
      %607 = vmatpush1.bf16.msra.mxu0 0
      %608 = vmatprep.mubr.bf16.mxu0 0
      %609 = vmatmul.mubr.bf16.gmra.mrb[0].mxu0 %v565
      %v610 = vpop.f32.mrb[0].mxu0
      %v611 = vadd.f32 0.0, %v610
      %v612 = vpop.f32.mrb[0].mxu0
      %v613 = vpop.f32.mrb[0].mxu0
      %v614 = vadd.f32 0.0, %v613
      %v615 = vpop.f32.mrb[0].mxu0
      %616 = vmatprep.mubr.bf16.mxu0 0
      %617 = vmatmul.mubr.bf16.gmra.mrb[0].mxu0 %v568
      %v618 = vpop.f32.mrb[0].mxu0
      %v619 = vadd.f32 0.0, %v618
      %v620 = vpop.f32.mrb[0].mxu0
      %v621 = vpop.f32.mrb[0].mxu0
      %v622 = vadd.f32 0.0, %v621
      %v623 = vpop.f32.mrb[0].mxu0
      %624 = vmatprep.mubr.bf16.mxu0 0
      %625 = vmatmul.mubr.bf16.gmra.mrb[0].mxu0 %v571
      %v626 = vpop.f32.mrb[0].mxu0
      %v627 = vadd.f32 0.0, %v626
      %v628 = vpop.f32.mrb[0].mxu0
      %v629 = vpop.f32.mrb[0].mxu0
      %v630 = vadd.f32 0.0, %v629
      %v631 = vpop.f32.mrb[0].mxu0
      %632 = vmatprep.mubr.bf16.mxu0 0
      %633 = vmatmul.mubr.bf16.gmra.mrb[0].mxu0 %v574
      %v634 = vpop.f32.mrb[0].mxu0
      %v635 = vadd.f32 0.0, %v634
      %v636 = vpop.f32.mrb[0].mxu0
      %v637 = vpop.f32.mrb[0].mxu0
      %v638 = vadd.f32 0.0, %v637
      %v639 = vpop.f32.mrb[0].mxu0
      %640 = vdwg.mxu0
      %v641 = vadd.f32 %v519, %v611
      %v642 = vadd.f32 %v522, %v614
      %v643 = vadd.f32 %v527, %v619
      %v644 = vadd.f32 %v530, %v622
      %v645 = vadd.f32 %v535, %v627
      %v646 = vadd.f32 %v538, %v630
      %v647 = vadd.f32 %v543, %v635
      %v648 = vadd.f32 %v546, %v638
      %v650 = vshrl.u32 %v228, 16
      %v652 = vrot.slane %v650, 4
      %v653 = vshll.u32 %v228, 16
      %v655 = vrot.slane %v653, 5
      %v656 = vor.u32 %v652, %v655
      %v657 = vrot.slane %v656, 4
      %v659 = vshll.u32 %v229, 16
      %v661 = vrot.slane %v659, 5
      %v662 = vsel %vm234, %v657, %v661
      %s663 = scalar_lea.vmem %s1, 24
      %v664 = vld [vmem:[%s663] sm:$0xf]
      %v665 = vld [vmem:[%s663 + $0x4] sm:$0xf]
      %v666 = vunpack.c.l.b16 %v662
      %v667 = vpack.c.b16 %v352, %v351
      %v668 = vpack.c.b16 %v354, %v353
      %v669 = vpack.c.b16 %v356, %v355
      %v670 = vpack.c.b16 %v666, %v357
      %v673 = vunpack.c.l.b16 %v664
      %v674 = vunpack.c.l.b16 %v665
      %v675 = vpack.c.b16 %v674, %v673
      %v678 = vsel %vm368, %v667, 0
      %v681 = vsel %vm368, %v668, 0
      %v684 = vsel %vm368, %v669, 0
      %v687 = vsel %vm368, %v670, 0
      %689 = vmatprep.subr.bf16.mxu0 0
      %690 = vmatpush1.bf16.msra.mxu0 %v675
      %691 = vmatprep.subr.bf16.mxu0 0
      %692 = vmatpush1.bf16.msra.mxu0 0
      %693 = vmatprep.subr.bf16.mxu0 0
      %694 = vmatpush1.bf16.msra.mxu0 0
      %695 = vmatprep.subr.bf16.mxu0 0
      %696 = vmatpush1.bf16.msra.mxu0 0
      %697 = vmatprep.subr.bf16.mxu0 0
      %698 = vmatpush1.bf16.msra.mxu0 0
      %699 = vmatprep.subr.bf16.mxu0 0
      %700 = vmatpush1.bf16.msra.mxu0 0
      %701 = vmatprep.subr.bf16.mxu0 0
      %702 = vmatpush1.bf16.msra.mxu0 0
      %703 = vmatprep.subr.bf16.mxu0 0
      %704 = vmatpush1.bf16.msra.mxu0 0
      %705 = vmatprep.subr.bf16.mxu0 0
      %706 = vmatpush1.bf16.msra.mxu0 0
      %707 = vmatprep.subr.bf16.mxu0 0
      %708 = vmatpush1.bf16.msra.mxu0 0
      %709 = vmatprep.subr.bf16.mxu0 0
      %710 = vmatpush1.bf16.msra.mxu0 0
      %711 = vmatprep.subr.bf16.mxu0 0
      %712 = vmatpush1.bf16.msra.mxu0 0
      %713 = vmatprep.subr.bf16.mxu0 0
      %714 = vmatpush1.bf16.msra.mxu0 0
      %715 = vmatprep.subr.bf16.mxu0 0
      %716 = vmatpush1.bf16.msra.mxu0 0
      %717 = vmatprep.subr.bf16.mxu0 0
      %718 = vmatpush1.bf16.msra.mxu0 0
      %719 = vmatprep.subr.bf16.mxu0 0
      %720 = vmatpush1.bf16.msra.mxu0 0
      %721 = vmatprep.mubr.bf16.mxu0 0
      %722 = vmatmul.mubr.bf16.gmra.mrb[0].mxu0 %v678
      %v723 = vpop.f32.mrb[0].mxu0
      %v724 = vadd.f32 0.0, %v723
      %v725 = vpop.f32.mrb[0].mxu0
      %v726 = vpop.f32.mrb[0].mxu0
      %v727 = vadd.f32 0.0, %v726
      %v728 = vpop.f32.mrb[0].mxu0
      %729 = vmatprep.mubr.bf16.mxu0 0
      %730 = vmatmul.mubr.bf16.gmra.mrb[0].mxu0 %v681
      %v731 = vpop.f32.mrb[0].mxu0
      %v732 = vadd.f32 0.0, %v731
      %v733 = vpop.f32.mrb[0].mxu0
      %v734 = vpop.f32.mrb[0].mxu0
      %v735 = vadd.f32 0.0, %v734
      %v736 = vpop.f32.mrb[0].mxu0
      %737 = vmatprep.mubr.bf16.mxu0 0
      %738 = vmatmul.mubr.bf16.gmra.mrb[0].mxu0 %v684
      %v739 = vpop.f32.mrb[0].mxu0
      %v740 = vadd.f32 0.0, %v739
      %v741 = vpop.f32.mrb[0].mxu0
      %v742 = vpop.f32.mrb[0].mxu0
      %v743 = vadd.f32 0.0, %v742
      %v744 = vpop.f32.mrb[0].mxu0
      %745 = vmatprep.mubr.bf16.mxu0 0
      %746 = vmatmul.mubr.bf16.gmra.mrb[0].mxu0 %v687
      %v747 = vpop.f32.mrb[0].mxu0
      %v748 = vadd.f32 0.0, %v747
      %v749 = vpop.f32.mrb[0].mxu0
      %v750 = vpop.f32.mrb[0].mxu0
      %v751 = vadd.f32 0.0, %v750
      %v752 = vpop.f32.mrb[0].mxu0
      %753 = vdwg.mxu0
      %v754 = vadd.f32 %v641, %v724
      %v755 = vadd.f32 %v642, %v727
      %v756 = vadd.f32 %v643, %v732
      %v757 = vadd.f32 %v644, %v735
      %v758 = vadd.f32 %v645, %v740
      %v759 = vadd.f32 %v646, %v743
      %v760 = vadd.f32 %v647, %v748
      %v761 = vadd.f32 %v648, %v751
      %v762 = vld [vmem:[#allocation2] sm:$0x1]
      %vm763 = vcmask 64512
      %v764 = vsel %vm763, %v754, 0.0
      %v765 = vsel %vm763, %v755, 0.0
      %v766 = vadd.f32 %v764, %v765
      %v767 = vsel %vm763, %v756, 0.0
      %v768 = vadd.f32 %v766, %v767
      %v769 = vsel %vm763, %v757, 0.0
      %v770 = vadd.f32 %v768, %v769
      %v771 = vsel %vm763, %v758, 0.0
      %v772 = vadd.f32 %v770, %v771
      %v773 = vsel %vm763, %v759, 0.0
      %v774 = vadd.f32 %v772, %v773
      %v775 = vsel %vm763, %v760, 0.0
      %v776 = vadd.f32 %v774, %v775
      %v777 = vsel %vm763, %v761, 0.0
      %v778 = vadd.f32 %v776, %v777
      %v779 = vrot.slane %v778, 4
      %v780 = vadd.f32 %v778, %v779
      %v781 = vrot.slane %v780, 2
      %v782 = vadd.f32 %v780, %v781
      %v783 = vrot.slane %v782, 1
      %v784 = vadd.f32 %v782, %v783
      %v785 = vadd.f32 %v762, %v784
      %vm786 = vcmask 57344
      %787 = vst.msk [vmem:[#allocation2] sm:$0x1] %vm786, %v785
      %v788 = vld [vmem:[#allocation3] sm:$0x1]
      %v789 = vmul.f32 %v754, %v754
      %v790 = vmul.f32 %v755, %v755
      %v791 = vmul.f32 %v756, %v756
      %v792 = vmul.f32 %v757, %v757
      %v793 = vmul.f32 %v758, %v758
      %v794 = vmul.f32 %v759, %v759
      %v795 = vmul.f32 %v760, %v760
      %v796 = vmul.f32 %v761, %v761
      %v797 = vsel %vm763, %v789, 0.0
      %v798 = vsel %vm763, %v790, 0.0
      %v799 = vadd.f32 %v797, %v798
      %v800 = vsel %vm763, %v791, 0.0
      %v801 = vadd.f32 %v799, %v800
      %v802 = vsel %vm763, %v792, 0.0
      %v803 = vadd.f32 %v801, %v802
      %v804 = vsel %vm763, %v793, 0.0
      %v805 = vadd.f32 %v803, %v804
      %v806 = vsel %vm763, %v794, 0.0
      %v807 = vadd.f32 %v805, %v806
      %v808 = vsel %vm763, %v795, 0.0
      %v809 = vadd.f32 %v807, %v808
      %v810 = vsel %vm763, %v796, 0.0
      %v811 = vadd.f32 %v809, %v810
      %v812 = vrot.slane %v811, 4
      %v813 = vadd.f32 %v811, %v812
      %v814 = vrot.slane %v813, 2
      %v815 = vadd.f32 %v813, %v814
      %v816 = vrot.slane %v815, 1
      %v817 = vadd.f32 %v815, %v816
      %v818 = vadd.f32 %v788, %v817
      %819 = vst.msk [vmem:[#allocation3] sm:$0x1] %vm786, %v818
      %820 = vxpose.xlu0.b32.start [1/16] %v754, 128
      %821 = vxpose.xlu0.b32.cont [2/16] %v755, 128
      %822 = vxpose.xlu0.b32.cont [3/16] %v756, 128
      %823 = vxpose.xlu0.b32.cont [4/16] %v757, 128
      %824 = vxpose.xlu0.b32.cont [5/16] %v758, 128
      %825 = vxpose.xlu0.b32.cont [6/16] %v759, 128
      %826 = vxpose.xlu0.b32.cont [7/16] %v760, 128
      %827 = vxpose.xlu0.b32.cont [8/16] %v761, 128
      %828 = vxpose.xlu0.b32.cont [9/16] 0.0, 128
      %829 = vxpose.xlu0.b32.cont [10/16] 0.0, 128
      %830 = vxpose.xlu0.b32.cont [11/16] 0.0, 128
      %831 = vxpose.xlu0.b32.cont [12/16] 0.0, 128
      %832 = vxpose.xlu0.b32.cont [13/16] 0.0, 128
      %833 = vxpose.xlu0.b32.cont [14/16] 0.0, 128
      %834 = vxpose.xlu0.b32.cont [15/16] 0.0, 128
      %835 = vxpose.xlu0.b32.end [16/16] 0.0, 128
      %v836 = vpop.trf.xlu0
      %v837 = vpop.trf.xlu0
      %v838 = vpop.trf.xlu0
      %v839 = vpop.trf.xlu0
      %v840 = vpop.trf.xlu0
      %v841 = vpop.trf.xlu0
      %v842 = vpop.trf.xlu0
      %v843 = vpop.trf.xlu0
      %v844 = vpop.trf.xlu0
      %v845 = vpop.trf.xlu0
      %v846 = vpop.trf.xlu0
      %v847 = vpop.trf.xlu0
      %v848 = vpop.trf.xlu0
      %v849 = vpop.trf.xlu0
      %v850 = vpop.trf.xlu0
      %v851 = vpop.trf.xlu0
      %vm852 = vcmask 523264
      %853 = vst.msk [vmem:[%s195] sm:$0xff] %vm852, %v836
      // Predicated region
      $region33: #{downsample_conv.2} parent=27 // pred_check
        %p854 = pneg %p201
      $region34: #{downsample_conv.2} parent=27 // pred_check_branch
        %856 = sbr.rel (%p854) target = $region36
      $region35: #{downsample_conv.2} parent=27 // pred_region
        %v857 = vld [vmem:[#allocation2] sm:$0x1]
        %858 = vst.msk [vmem:[%s199] sm:$0x1] %vm786, %v857
        %v859 = vld [vmem:[#allocation3] sm:$0x1]
        %860 = vst.msk [vmem:[%s199 + $0x1] sm:$0x1] %vm786, %v859
      $region36: #{downsample_conv.2} parent=27 // pred_fallthru
        _
      %p861 = scmp.lt.s32.totalorder %s19, 1
      %s862 = scalar_select %p861, %s19, 1
      %p863 = scmp.lt.s32.totalorder %s20, 0
      %s864 = scalar_select %p863, %s20, 0
      %s865 = sadd.s32 %s864, %s862
      %s866 = smul.addr %s865, 8
      %s867 = scalar_lea.vmem %s2, %s866
      %p868 = scmp.lt.s32.totalorder %s19, 1
      %s869 = scalar_select %p868, %s19, 1
      %s870 = smul.addr %s869, 2
      %s871 = scalar_lea.vmem %s3, %s870
      // Predicated region
      $region37: #{downsample_conv.2} parent=27 // pred_check
        %p872 = pneg %p94
      $region38: #{downsample_conv.2} parent=27 // pred_check_branch
        %874 = sbr.rel (%p872) target = $region40
      $region39: #{downsample_conv.2} parent=27 // pred_region
        _
      $region40: #{downsample_conv.2} parent=27 // pred_fallthru
        _
      // Predicated region
      $region41: #{downsample_conv.2} parent=27 // pred_check
        %p875 = pneg %p120
      $region42: #{downsample_conv.2} parent=27 // pred_check_branch
        %877 = sbr.rel (%p875) target = $region44
      $region43: #{downsample_conv.2} parent=27 // pred_region
        _
      $region44: #{downsample_conv.2} parent=27 // pred_fallthru
        _
    $region28: #{downsample_conv.2} parent=5 // pred_fallthru
      _
    %p878 = scmp.le.s32.totalorder 2, %s10
    // Predicated region
    $region45: #{downsample_conv.2} parent=5 // pred_check
      %p879 = pneg %p878
    $region46: #{downsample_conv.2} parent=5 // pred_check_branch
      %881 = sbr.rel (%p879) target = $region48
    $region47: #{downsample_conv.2} parent=5 // pred_region
      %s882 = ssub.s32 %s10, 2
      // Predicated region
      $region49: #{downsample_conv.2} parent=47 // pred_check
        %p883 = pneg %p100
      $region50: #{downsample_conv.2} parent=47 // pred_check_branch
        %885 = sbr.rel (%p883) target = $region52
      $region51: #{downsample_conv.2} parent=47 // pred_region
        %p886 = scmp.lt.s32.totalorder %s21, 1
        %s887 = scalar_select %p886, %s21, 1
        %p888 = scmp.lt.s32.totalorder %s22, 0
        %s889 = scalar_select %p888, %s22, 0
        %s890 = sadd.s32 %s889, %s887
        %s891 = smul.addr %s890, 8
        %s892 = scalar_lea.vmem %s2, %s891
      $region52: #{downsample_conv.2} parent=47 // pred_fallthru
        _
      // Predicated region
      $region53: #{downsample_conv.2} parent=47 // pred_check
        %p893 = pneg %p126
      $region54: #{downsample_conv.2} parent=47 // pred_check_branch
        %895 = sbr.rel (%p893) target = $region56
      $region55: #{downsample_conv.2} parent=47 // pred_region
        %p896 = scmp.lt.s32.totalorder %s21, 1
        %s897 = scalar_select %p896, %s21, 1
        %s898 = smul.addr %s897, 2
        %s899 = scalar_lea.vmem %s3, %s898
      $region56: #{downsample_conv.2} parent=47 // pred_fallthru
        _
    $region48: #{downsample_conv.2} parent=5 // pred_fallthru
      _
  $region6: #{downsample_conv.2} parent=0 // loop_footer
    %s14 = sadd.s32 1, %s10
  $region7: #{downsample_conv.2} parent=0 // loop_footer_branch
    %9 = sbr.rel target = $region3
  $region8: #{downsample_conv.2} parent=0 // loop_exit
    _

</llo_original>
